<compile_context>
chip_gen: v7x
topology: tpu7x:2x2x1
jax: 0.10.0
libtpu: 0.0.40
codegen_flags: <defaults>
</compile_context>

<pallas_src>
import functools

import jax
import jax.numpy as jnp
from jax.experimental import pallas as pl
from jax.experimental.pallas import tpu as pltpu


def _round_up(v, m):
    return ((v + m - 1) // m) * m


def _sublane(dtype):
    """Sublane multiple for a dtype (8 for 32-bit, 16 for bf16, 32 for int8)."""
    return max(8, 32 // jnp.dtype(dtype).itemsize)


def _pick_tile(dim, preferred):
    """Largest tile <= preferred that divides dim (dim is 128-aligned)."""
    t = min(preferred, dim)
    while dim % t:
        t //= 2
    return max(t, 1)


def _vmem_budget_bytes():
    """~85% of physical VMEM (leaves compiler-scratch headroom), per-chip aware."""
    try:
        cap = int(pltpu.get_tpu_info().vmem_capacity_bytes)
    except Exception:
        cap = 64 << 20          # conservative (v7x-sized) fallback
    return max(16 << 20, int(cap * 0.85))


def _try_variants(*builders):
    """Run builders in order, returning the first that lowers/executes cleanly."""
    err = None
    for build in builders:
        try:
            return build()
        except Exception as e:      # fall back to a more conservative config
            err = e
    raise err


# ---------------------------------------------------------------------------
# Kernels
# ---------------------------------------------------------------------------
def _fused_mlp_kernel(*refs, num_layers):
    # refs = (x_ref, w0, b0, w1, b1, ..., o_ref)
    x_ref = refs[0]
    o_ref = refs[-1]
    h = x_ref[...]
    for li in range(num_layers):
        w_ref = refs[1 + 2 * li]
        b_ref = refs[2 + 2 * li]
        # MXU matmul with f32 accumulation; bias + ReLU on the f32 result (VPU).
        h = jnp.dot(h.astype(w_ref.dtype), w_ref[...],
                    preferred_element_type=jnp.float32)
        h = jnp.maximum(h + b_ref[...].astype(jnp.float32), 0.0)
    o_ref[...] = h.astype(o_ref.dtype)


def _tiled_linear_kernel(x_ref, w_ref, b_ref, o_ref, acc_ref):
    k = pl.program_id(2)

    @pl.when(k == 0)
    def _():
        acc_ref[...] = jnp.zeros_like(acc_ref)

    acc_ref[...] += jnp.dot(x_ref[...], w_ref[...],
                            preferred_element_type=jnp.float32)

    @pl.when(k == pl.num_programs(2) - 1)
    def _():
        r = acc_ref[...] + b_ref[...].astype(jnp.float32)
        o_ref[...] = jnp.maximum(r, 0.0).astype(o_ref.dtype)


# ---------------------------------------------------------------------------
# Wrapper: pads parameters once, dispatches fused vs tiled.
# ---------------------------------------------------------------------------
class PallasMLP:
    """ReLU(x @ W_i + b_i) after every Linear — matches the PyTorch module."""

    def __init__(self, params, in_features, *, dtype=None, force_tiled=False):
        self.dtype = jnp.dtype(dtype) if dtype is not None else jnp.dtype(params[0][0].dtype)
        self.in_features = in_features
        self.force_tiled = force_tiled
        self.sizes = [in_features] + [w.shape[1] for (w, _) in params]
        self.padded = [_round_up(s, 128) for s in self.sizes]   # lane-dense dims

        # Pre-pad weights/biases ONCE (avoids per-call HBM re-pad traffic).
        self.w_pads, self.b_pads = [], []
        for li, (w, b) in enumerate(params):
            kin, kout = w.shape
            pin, pout = self.padded[li], self.padded[li + 1]
            w = w.astype(self.dtype)
            b = b.astype(self.dtype)
            if (kin, kout) == (pin, pout):
                w_p = w
            else:
                w_p = jnp.zeros((pin, pout), self.dtype).at[:kin, :kout].set(w)
            if kout == pout:
                b_p = b.reshape(1, pout)
            else:
                b_p = jnp.zeros((1, pout), self.dtype).at[0, :kout].set(b)
            self.w_pads.append(w_p)
            self.b_pads.append(b_p)

        itemsize = self.dtype.itemsize
        self.w_bytes = sum(int(w.size) for w in self.w_pads) * itemsize
        self.b_bytes = sum(int(b.size) for b in self.b_pads) * itemsize
        self.vmem_budget = _vmem_budget_bytes()
        # Keep nets fused as long as resident weights use <~40% of the budget
        # (rest is activation tiles / f32 intermediates / double-buffer headroom).
        self.fused_weight_budget = int(self.vmem_budget * 0.4)

    # -- public forward -----------------------------------------------------
    def __call__(self, x):
        assert x.ndim == 2 and x.shape[1] == self.in_features
        if self.force_tiled or (self.w_bytes + self.b_bytes) > self.fused_weight_budget:
            # TODO(synk): keep the layer chain in one kernel and tile K/N inside it
            # (pltpu.emit_pipeline over K blocks, activation held in VMEM scratch)
            # instead of per-layer pallas_calls for very wide/deep MLPs.
            return self._forward_tiled(x)
        return self._forward_fused(x)

    # -- helpers --------------------------------------------------------------
    def _pad_x(self, x, m_pad):
        batch, f = x.shape
        x = x.astype(self.dtype)
        if batch == m_pad and f == self.padded[0]:
            return x                         # fast path: already aligned
        return jnp.zeros((m_pad, self.padded[0]), self.dtype).at[:batch, :f].set(x)

    def _fused_tile(self, batch):
        sub = _sublane(self.dtype)
        itemsize = self.dtype.itemsize
        m_sub = _round_up(batch, sub)
        tm = min(512, m_sub)
        if m_sub > sub:
            # >= 2 grid steps so the 'parallel' batch axis shards across v7x's
            # two TensorCores (harmless elsewhere).
            tm = min(tm, _round_up((m_sub + 1) // 2, sub))
        tm = max(tm, sub)
        # Shrink tm if activation tiles would not fit next to (conservatively
        # double-buffered) weights.
        resident = 2 * (self.w_bytes + self.b_bytes)
        per_row = (2 * (self.padded[0] + self.padded[-1]) * itemsize
                   + 3 * max(self.padded) * 4)
        while tm > sub and resident + tm * per_row > self.vmem_budget:
            tm = max(sub, _round_up(tm // 2, sub))
        m_pad = _round_up(m_sub, tm)            # pad batch UP to the tile
        return m_pad, tm

    # -- fused path: one pallas_call, weights VMEM-resident -------------------
    def _forward_fused(self, x):
        batch = x.shape[0]
        dtype = self.dtype
        itemsize = dtype.itemsize
        n_layers = len(self.w_pads)
        m_pad, tm = self._fused_tile(batch)
        x_p = self._pad_x(x, m_pad)

        flops = 2 * m_pad * sum(self.padded[i] * self.padded[i + 1]
                                for i in range(n_layers))
        bytes_accessed = (itemsize * m_pad * (self.padded[0] + self.padded[-1])
                          + self.w_bytes + self.b_bytes)
        cost = pl.CostEstimate(flops=int(flops), transcendentals=0,
                               bytes_accessed=int(bytes_accessed))
        args = [x_p] + [a for wb in zip(self.w_pads, self.b_pads) for a in wb]

        def build(single_buffer_weights):
            # Constant index_map => weights/biases fetched from HBM once and
            # reused by every batch tile; request a single buffer for them.
            wkw = dict(pipeline_mode=pl.Buffered(1)) if single_buffer_weights else {}
            in_specs = [pl.BlockSpec((tm, self.padded[0]), lambda i: (i, 0))]
            for li in range(n_layers):
                pin, pout = self.padded[li], self.padded[li + 1]
                in_specs.append(pl.BlockSpec((pin, pout), lambda i: (0, 0), **wkw))
                in_specs.append(pl.BlockSpec((1, pout), lambda i: (0, 0), **wkw))
            w_factor = 1 if single_buffer_weights else 2
            needed = (w_factor * (self.w_bytes + self.b_bytes)
                      + 2 * tm * (self.padded[0] + self.padded[-1]) * itemsize
                      + 3 * tm * max(self.padded) * 4
                      + (2 << 20))
            vmem_limit = int(min(self.vmem_budget, max(needed, 16 << 20)))
            return pl.pallas_call(
                functools.partial(_fused_mlp_kernel, num_layers=n_layers),
                out_shape=jax.ShapeDtypeStruct((m_pad, self.padded[-1]), dtype),
                grid=(m_pad // tm,),
                in_specs=in_specs,
                out_specs=pl.BlockSpec((tm, self.padded[-1]), lambda i: (i, 0)),
                compiler_params=pltpu.CompilerParams(
                    dimension_semantics=("parallel",),
                    vmem_limit_bytes=vmem_limit,
                ),
                cost_estimate=cost,
            )(*args)

        out_p = _try_variants(lambda: build(True), lambda: build(False))
        return out_p[:batch, :self.sizes[-1]]

    # -- tiled fallback: per-layer matmul with K reduction on the grid --------
    def _forward_tiled(self, x):
        batch = x.shape[0]
        sub = _sublane(self.dtype)
        m_sub = _round_up(batch, sub)
        tm = min(256, m_sub)                    # bigger M tile halves weight restreams
        m_pad = _round_up(m_sub, tm)            # pad batch up to the tile
        h = self._pad_x(x, m_pad)
        for li in range(len(self.w_pads)):
            h = self._linear_relu_tiled(h, self.w_pads[li], self.b_pads[li], tm)
        return h[:batch, :self.sizes[-1]]

    def _linear_relu_tiled(self, x_p, w_p, b_p, tm):
        Mp, Kp = x_p.shape
        _, Np = w_p.shape
        dtype = self.dtype
        itemsize = dtype.itemsize
        tn = _pick_tile(Np, 256)
        tk = _pick_tile(Kp, 512)
        kt = Kp // tk

        flops = 2 * Mp * Kp * Np
        bytes_accessed = itemsize * (Mp * Kp + (Mp // tm) * Kp * Np + Np + Mp * Np)
        cost = pl.CostEstimate(flops=int(flops), transcendentals=0,
                               bytes_accessed=int(bytes_accessed))

        def build(w_buffers):
            wkw, nbuf = {}, 2
            if w_buffers is not None:
                wkw, nbuf = dict(pipeline_mode=pl.Buffered(w_buffers)), w_buffers
            needed = ((2 * tm * tk + nbuf * tk * tn + 2 * tn) * itemsize
                      + tm * tn * (4 + 2 * itemsize) + (2 << 20))
            vmem_limit = int(min(self.vmem_budget, max(needed, 16 << 20)))
            return pl.pallas_call(
                _tiled_linear_kernel,
                out_shape=jax.ShapeDtypeStruct((Mp, Np), dtype),
                grid=(Mp // tm, Np // tn, kt),
                in_specs=[
                    pl.BlockSpec((tm, tk), lambda i, j, k: (i, k)),
                    pl.BlockSpec((tk, tn), lambda i, j, k: (k, j), **wkw),
                    pl.BlockSpec((1, tn), lambda i, j, k: (0, j)),
                ],
                out_specs=pl.BlockSpec((tm, tn), lambda i, j, k: (i, j)),
                scratch_shapes=[pltpu.VMEM((tm, tn), jnp.float32)],
                compiler_params=pltpu.CompilerParams(
                    dimension_semantics=("parallel", "parallel", "arbitrary"),
                    vmem_limit_bytes=vmem_limit,
                ),
                cost_estimate=cost,
            )(x_p, w_p, b_p)

        if kt >= 3:
            # Third buffer on the streamed weight hides HBM fetch behind the MXU.
            return _try_variants(lambda: build(3), lambda: build(None))
        return build(None)


def mlp_forward(x, params, **kwargs):
    """Convenience one-shot wrapper (prefer constructing PallasMLP once)."""
    return PallasMLP(params, x.shape[1], **kwargs)(x)


# ---------------------------------------------------------------------------
# Reference + init (mimics nn.Linear's uniform(-1/sqrt(fan_in), 1/sqrt(fan_in)))
# ---------------------------------------------------------------------------
def init_mlp_params(key, sizes, dtype=jnp.float32):
    params = []
    for i in range(len(sizes) - 1):
        key, kw, kb = jax.random.split(key, 3)
        bound = 1.0 / (sizes[i] ** 0.5)
        w = jax.random.uniform(kw, (sizes[i], sizes[i + 1]), dtype, -bound, bound)
        b = jax.random.uniform(kb, (sizes[i + 1],), dtype, -bound, bound)
        params.append((w, b))
    return params


def mlp_reference(x, params):
    for (w, b) in params:
        x = jnp.maximum(x @ w + b[None, :], 0.0)
    return x


if __name__ == "__main__":
    key = jax.random.PRNGKey(0)
    sizes = [32, 64, 16]          # MLP(sizes=[32, 64, 16], nonLinearFunc=nn.ReLU())
    batch = 4

    kx, kp = jax.random.split(key)
    x = jax.random.normal(kx, (batch, sizes[0]), jnp.float32)
    params = init_mlp_params(kp, sizes)

    ref = mlp_reference(x, params)

    # Fused path (weights padded once at construction, VMEM-resident in kernel).
    mlp = PallasMLP(params, in_features=sizes[0])
    out_fused = jax.block_until_ready(mlp(x))
    assert out_fused.shape == (batch, sizes[-1])
    assert jnp.allclose(out_fused, ref, atol=2e-5, rtol=2e-5)

    # Tiled fallback path (exercised for correctness coverage).
    mlp_tiled = PallasMLP(params, in_features=sizes[0], force_tiled=True)
    out_tiled = jax.block_until_ready(mlp_tiled(x))
    assert out_tiled.shape == (batch, sizes[-1])
    assert jnp.allclose(out_tiled, ref, atol=2e-5, rtol=2e-5)

    print("KERNEL_OK")
</pallas_src>

<mosaic_0001>
module attributes {stable_mosaic.version = 11 : i64} {
  func.func @_fused_mlp_kernel(%arg0: i32, %arg1: memref<8x128xf32, #tpu.memory_space<vmem>>, %arg2: memref<128x128xf32, #tpu.memory_space<vmem>>, %arg3: memref<1x128xf32, #tpu.memory_space<vmem>>, %arg4: memref<128x128xf32, #tpu.memory_space<vmem>>, %arg5: memref<1x128xf32, #tpu.memory_space<vmem>>, %arg6: memref<8x128xf32, #tpu.memory_space<vmem>>) attributes {dimension_semantics = [#tpu.dimension_semantics<parallel>], iteration_bounds = array<i64: 1>, scalar_prefetch = 0 : i64, scratch_operands = 0 : i64, tpu.core_type = #tpu.core_type<tc>, window_params = [{transform_indices = @transform_0, window_bounds = array<i64: 8, 128>}, {pipeline_mode = #tpu.pipeline_mode<synchronous>, transform_indices = @transform_1, window_bounds = array<i64: 128, 128>}, {pipeline_mode = #tpu.pipeline_mode<synchronous>, transform_indices = @transform_2, window_bounds = array<i64: 1, 128>}, {pipeline_mode = #tpu.pipeline_mode<synchronous>, transform_indices = @transform_3, window_bounds = array<i64: 128, 128>}, {pipeline_mode = #tpu.pipeline_mode<synchronous>, transform_indices = @transform_4, window_bounds = array<i64: 1, 128>}, {transform_indices = @transform_5, window_bounds = array<i64: 8, 128>}]} {
    %c0 = arith.constant 0 : index
    %c0_0 = arith.constant 0 : index
    %0 = vector.load %arg1[%c0, %c0_0] : memref<8x128xf32, #tpu.memory_space<vmem>>, vector<8x128xf32>
    %c0_1 = arith.constant 0 : index
    %c0_2 = arith.constant 0 : index
    %1 = vector.load %arg2[%c0_1, %c0_2] : memref<128x128xf32, #tpu.memory_space<vmem>>, vector<128x128xf32>
    %cst = arith.constant dense<0.000000e+00> : vector<8x128xf32>
    %2 = tpu.matmul %0, %1, %cst {dimension_numbers = #tpu.dot_dimension_numbers<[1], [0], [0], [1], [0, 0, 1, 1], [], []>} : vector<8x128xf32>, vector<128x128xf32>, vector<8x128xf32> -> vector<8x128xf32>
    %c0_3 = arith.constant 0 : index
    %c0_4 = arith.constant 0 : index
    %3 = vector.load %arg3[%c0_3, %c0_4] : memref<1x128xf32, #tpu.memory_space<vmem>>, vector<1x128xf32>
    %4 = vector.broadcast %3 : vector<1x128xf32> to vector<8x128xf32>
    %5 = arith.addf %2, %4 : vector<8x128xf32>
    %cst_5 = arith.constant 0.000000e+00 : f32
    %6 = vector.broadcast %cst_5 : f32 to vector<8x128xf32>
    %7 = arith.maximumf %5, %6 : vector<8x128xf32>
    %c0_6 = arith.constant 0 : index
    %c0_7 = arith.constant 0 : index
    %8 = vector.load %arg4[%c0_6, %c0_7] : memref<128x128xf32, #tpu.memory_space<vmem>>, vector<128x128xf32>
    %cst_8 = arith.constant dense<0.000000e+00> : vector<8x128xf32>
    %9 = tpu.matmul %7, %8, %cst_8 {dimension_numbers = #tpu.dot_dimension_numbers<[1], [0], [0], [1], [0, 0, 1, 1], [], []>} : vector<8x128xf32>, vector<128x128xf32>, vector<8x128xf32> -> vector<8x128xf32>
    %c0_9 = arith.constant 0 : index
    %c0_10 = arith.constant 0 : index
    %10 = vector.load %arg5[%c0_9, %c0_10] : memref<1x128xf32, #tpu.memory_space<vmem>>, vector<1x128xf32>
    %11 = vector.broadcast %10 : vector<1x128xf32> to vector<8x128xf32>
    %12 = arith.addf %9, %11 : vector<8x128xf32>
    %cst_11 = arith.constant 0.000000e+00 : f32
    %13 = vector.broadcast %cst_11 : f32 to vector<8x128xf32>
    %14 = arith.maximumf %12, %13 : vector<8x128xf32>
    %c0_12 = arith.constant 0 : index
    %c0_13 = arith.constant 0 : index
    %15 = vector.load %arg6[%c0_12, %c0_13] : memref<8x128xf32, #tpu.memory_space<vmem>>, vector<8x128xf32>
    tpu.vector_store %arg6[%c0_12, %c0_13], %14 {strides = array<i32>} : memref<8x128xf32, #tpu.memory_space<vmem>>, vector<8x128xf32>,
    return
  }
  func.func @transform_0(%arg0: i32) -> (i32, i32) {
    %c0_i32 = arith.constant 0 : i32
    %c0_i32_0 = arith.constant 0 : i32
    return %arg0, %c0_i32 : i32, i32
  }
  func.func @transform_1(%arg0: i32) -> (i32, i32) {
    %c0_i32 = arith.constant 0 : i32
    %c0_i32_0 = arith.constant 0 : i32
    %c0_i32_1 = arith.constant 0 : i32
    return %c0_i32, %c0_i32_0 : i32, i32
  }
  func.func @transform_2(%arg0: i32) -> (i32, i32) {
    %c0_i32 = arith.constant 0 : i32
    %c0_i32_0 = arith.constant 0 : i32
    %c0_i32_1 = arith.constant 0 : i32
    return %c0_i32, %c0_i32_0 : i32, i32
  }
  func.func @transform_3(%arg0: i32) -> (i32, i32) {
    %c0_i32 = arith.constant 0 : i32
    %c0_i32_0 = arith.constant 0 : i32
    %c0_i32_1 = arith.constant 0 : i32
    return %c0_i32, %c0_i32_0 : i32, i32
  }
  func.func @transform_4(%arg0: i32) -> (i32, i32) {
    %c0_i32 = arith.constant 0 : i32
    %c0_i32_0 = arith.constant 0 : i32
    %c0_i32_1 = arith.constant 0 : i32
    return %c0_i32, %c0_i32_0 : i32, i32
  }
  func.func @transform_5(%arg0: i32) -> (i32, i32) {
    %c0_i32 = arith.constant 0 : i32
    %c0_i32_0 = arith.constant 0 : i32
    return %arg0, %c0_i32 : i32, i32
  }
}

module attributes {stable_mosaic.version = 11 : i64} {
  func.func @_fused_mlp_kernel(%arg0: i32, %arg1: memref<8x128xf32, #tpu.memory_space<vmem>>, %arg2: memref<128x128xf32, #tpu.memory_space<vmem>>, %arg3: memref<1x128xf32, #tpu.memory_space<vmem>>, %arg4: memref<128x128xf32, #tpu.memory_space<vmem>>, %arg5: memref<1x128xf32, #tpu.memory_space<vmem>>, %arg6: memref<8x128xf32, #tpu.memory_space<vmem>>) attributes {dimension_semantics = [#tpu.dimension_semantics<parallel>], iteration_bounds = array<i64: 1>, scalar_prefetch = 0 : i64, scratch_operands = 0 : i64, tpu.core_type = #tpu.core_type<tc>, window_params = [{transform_indices = @transform_0, window_bounds = array<i64: 8, 128>}, {pipeline_mode = #tpu.pipeline_mode<synchronous>, transform_indices = @transform_1, window_bounds = array<i64: 128, 128>}, {pipeline_mode = #tpu.pipeline_mode<synchronous>, transform_indices = @transform_2, window_bounds = array<i64: 1, 128>}, {pipeline_mode = #tpu.pipeline_mode<synchronous>, transform_indices = @transform_3, window_bounds = array<i64: 128, 128>}, {pipeline_mode = #tpu.pipeline_mode<synchronous>, transform_indices = @transform_4, window_bounds = array<i64: 1, 128>}, {transform_indices = @transform_5, window_bounds = array<i64: 8, 128>}]} {
    %c0 = arith.constant 0 : index
    %c0_0 = arith.constant 0 : index
    %0 = vector.load %arg1[%c0, %c0_0] : memref<8x128xf32, #tpu.memory_space<vmem>>, vector<8x128xf32>
    %c0_1 = arith.constant 0 : index
    %c0_2 = arith.constant 0 : index
    %1 = vector.load %arg2[%c0_1, %c0_2] : memref<128x128xf32, #tpu.memory_space<vmem>>, vector<128x128xf32>
    %cst = arith.constant dense<0.000000e+00> : vector<8x128xf32>
    %2 = tpu.matmul %0, %1, %cst {dimension_numbers = #tpu.dot_dimension_numbers<[1], [0], [0], [1], [0, 0, 1, 1], [], []>} : vector<8x128xf32>, vector<128x128xf32>, vector<8x128xf32> -> vector<8x128xf32>
    %c0_3 = arith.constant 0 : index
    %c0_4 = arith.constant 0 : index
    %3 = vector.load %arg3[%c0_3, %c0_4] : memref<1x128xf32, #tpu.memory_space<vmem>>, vector<1x128xf32>
    %4 = vector.broadcast %3 : vector<1x128xf32> to vector<8x128xf32>
    %5 = arith.addf %2, %4 : vector<8x128xf32>
    %cst_5 = arith.constant 0.000000e+00 : f32
    %6 = vector.broadcast %cst_5 : f32 to vector<8x128xf32>
    %7 = arith.maximumf %5, %6 : vector<8x128xf32>
    %c0_6 = arith.constant 0 : index
    %c0_7 = arith.constant 0 : index
    %8 = vector.load %arg4[%c0_6, %c0_7] : memref<128x128xf32, #tpu.memory_space<vmem>>, vector<128x128xf32>
    %cst_8 = arith.constant dense<0.000000e+00> : vector<8x128xf32>
    %9 = tpu.matmul %7, %8, %cst_8 {dimension_numbers = #tpu.dot_dimension_numbers<[1], [0], [0], [1], [0, 0, 1, 1], [], []>} : vector<8x128xf32>, vector<128x128xf32>, vector<8x128xf32> -> vector<8x128xf32>
    %c0_9 = arith.constant 0 : index
    %c0_10 = arith.constant 0 : index
    %10 = vector.load %arg5[%c0_9, %c0_10] : memref<1x128xf32, #tpu.memory_space<vmem>>, vector<1x128xf32>
    %11 = vector.broadcast %10 : vector<1x128xf32> to vector<8x128xf32>
    %12 = arith.addf %9, %11 : vector<8x128xf32>
    %cst_11 = arith.constant 0.000000e+00 : f32
    %13 = vector.broadcast %cst_11 : f32 to vector<8x128xf32>
    %14 = arith.maximumf %12, %13 : vector<8x128xf32>
    %c0_12 = arith.constant 0 : index
    %c0_13 = arith.constant 0 : index
    %15 = vector.load %arg6[%c0_12, %c0_13] : memref<8x128xf32, #tpu.memory_space<vmem>>, vector<8x128xf32>
    tpu.vector_store %arg6[%c0_12, %c0_13], %14 {strides = array<i32>} : memref<8x128xf32, #tpu.memory_space<vmem>>, vector<8x128xf32>,
    return
  }
  func.func @transform_0(%arg0: i32) -> (i32, i32) {
    %c0_i32 = arith.constant 0 : i32
    %c0_i32_0 = arith.constant 0 : i32
    return %arg0, %c0_i32 : i32, i32
  }
  func.func @transform_1(%arg0: i32) -> (i32, i32) {
    %c0_i32 = arith.constant 0 : i32
    %c0_i32_0 = arith.constant 0 : i32
    %c0_i32_1 = arith.constant 0 : i32
    return %c0_i32, %c0_i32_0 : i32, i32
  }
  func.func @transform_2(%arg0: i32) -> (i32, i32) {
    %c0_i32 = arith.constant 0 : i32
    %c0_i32_0 = arith.constant 0 : i32
    %c0_i32_1 = arith.constant 0 : i32
    return %c0_i32, %c0_i32_0 : i32, i32
  }
  func.func @transform_3(%arg0: i32) -> (i32, i32) {
    %c0_i32 = arith.constant 0 : i32
    %c0_i32_0 = arith.constant 0 : i32
    %c0_i32_1 = arith.constant 0 : i32
    return %c0_i32, %c0_i32_0 : i32, i32
  }
  func.func @transform_4(%arg0: i32) -> (i32, i32) {
    %c0_i32 = arith.constant 0 : i32
    %c0_i32_0 = arith.constant 0 : i32
    %c0_i32_1 = arith.constant 0 : i32
    return %c0_i32, %c0_i32_0 : i32, i32
  }
  func.func @transform_5(%arg0: i32) -> (i32, i32) {
    %c0_i32 = arith.constant 0 : i32
    %c0_i32_0 = arith.constant 0 : i32
    return %arg0, %c0_i32 : i32, i32
  }
}

</mosaic_0001>

<llo_original>
// kernel: tpu_custom_call.1
$region0: #{tpu_custom_call.1}
  #allocation0 [shape = 'u32[]', space=smem, size = 0x4, offset = 0x4, fixed_abs, tag = 'smem constant byte address 0x4 - core index']
  #allocation1 [shape = 'u32[144,128]{1,0:T(1,128)}', space=vmem, size = 0x12000, scoped, tag = 'internal scratch']
  %s0 = inlined_call_operand.hbm [shape: f32[8,128], index: 0, kind: input, shape index: {}]
  %s1 = inlined_call_operand.hbm [shape: f32[128,128], index: 1, kind: input, shape index: {}]
  %s2 = inlined_call_operand.vmem [shape: f32[1,128], index: 2, kind: input, shape index: {}]
  %s3 = inlined_call_operand.hbm [shape: f32[128,128], index: 3, kind: input, shape index: {}]
  %s4 = inlined_call_operand.vmem [shape: f32[1,128], index: 4, kind: input, shape index: {}]
  %s5 = inlined_call_operand.hbm [shape: f32[8,128], index: 5, kind: output, shape index: {}]
  %s6 = sld [smem:[#allocation0]]
  $region42: #{tpu_custom_call.1} parent=0
    _
  %s8 = ssub.s32 1, %s6
  %s9 = scalar_select 0, %s8, %s6
  $region1: #{tpu_custom_call.1} parent=0
    #allocation2 [shape = 'u8[4096]{0}', space=vmem, size = 0x1000, scoped, tag = 'input window, operand 0, single buffered']
    #allocation3 [shape = 's32[1]{0}', space=sflag, size = 0x4, scoped, tag = 'scoped memory for tpu_custom_call.1']
    #allocation4 [shape = 's32[1]{0}', space=sflag, size = 0x4, scoped, tag = 'scoped memory for tpu_custom_call.1']
    #allocation5 [shape = 'u8[65536]{0}', space=vmem, size = 0x10000, scoped, tag = 'input window, operand 1, single buffered']
    #allocation6 [shape = 's32[1]{0}', space=sflag, size = 0x4, scoped, tag = 'scoped memory for tpu_custom_call.1']
    #allocation7 [shape = 'u8[65536]{0}', space=vmem, size = 0x10000, scoped, tag = 'input window, operand 3, single buffered']
    #allocation8 [shape = 'u8[4096]{0}', space=vmem, size = 0x1000, scoped, tag = 'output window, operand 0, single buffered']
    %10 = vsyncpa [#allocation3], 0
    %11 = vsyncpa [#allocation6], 0
    %12 = vsyncpa [#allocation4], 0
    // Predicated region
    $region2: #{tpu_custom_call.1} parent=1 // pred_check
      _
    $region3: #{tpu_custom_call.1} parent=1 // pred_check_branch
      %14 = sbr.rel (0) target = $region5
    $region4: #{tpu_custom_call.1} parent=1 // pred_region
      %s16 = ssub.s32 128, 128
      %17 = vsyncadd [#allocation3], %s16
      %s19 = sshll.u32 [#allocation2], 4
      %s20 = int_to_ptr.vmem [resolvable:$true] %s19
      %22 = dma.hbm_to_vmem [thread:$0]  %s0, 128, %s20, [#allocation3]
    $region5: #{tpu_custom_call.1} parent=1 // pred_fallthru
      _
    // Predicated region
    $region6: #{tpu_custom_call.1} parent=1 // pred_check
      _
    $region7: #{tpu_custom_call.1} parent=1 // pred_check_branch
      %24 = sbr.rel (0) target = $region9
    $region8: #{tpu_custom_call.1} parent=1 // pred_region
      %s26 = ssub.s32 2048, 2048
      %27 = vsyncadd [#allocation6], %s26
      %s28 = sshll.u32 [#allocation5], 4
      %s29 = int_to_ptr.vmem [resolvable:$true] %s28
      %34 = dma.hbm_to_vmem [thread:$0]  %s1, 2048, %s29, [#allocation6], 128, 128, 8
    $region9: #{tpu_custom_call.1} parent=1 // pred_fallthru
      _
    // Predicated region
    $region10: #{tpu_custom_call.1} parent=1 // pred_check
      _
    $region11: #{tpu_custom_call.1} parent=1 // pred_check_branch
      %36 = sbr.rel (0) target = $region13
    $region12: #{tpu_custom_call.1} parent=1 // pred_region
      _
    $region13: #{tpu_custom_call.1} parent=1 // pred_fallthru
      _
    // Predicated region
    $region14: #{tpu_custom_call.1} parent=1 // pred_check
      _
    $region15: #{tpu_custom_call.1} parent=1 // pred_check_branch
      %38 = sbr.rel (0) target = $region17
    $region16: #{tpu_custom_call.1} parent=1 // pred_region
      %s40 = ssub.s32 2048, 2048
      %41 = vsyncadd [#allocation6], %s40
      %s42 = sshll.u32 [#allocation7], 4
      %s43 = int_to_ptr.vmem [resolvable:$true] %s42
      %48 = dma.hbm_to_vmem [thread:$0]  %s3, 2048, %s43, [#allocation6], 128, 128, 8
    $region17: #{tpu_custom_call.1} parent=1 // pred_fallthru
      _
    // Predicated region
    $region18: #{tpu_custom_call.1} parent=1 // pred_check
      _
    $region19: #{tpu_custom_call.1} parent=1 // pred_check_branch
      %50 = sbr.rel (0) target = $region21
    $region20: #{tpu_custom_call.1} parent=1 // pred_region
      _
    $region21: #{tpu_custom_call.1} parent=1 // pred_fallthru
      _
    // Predicated region
    $region22: #{tpu_custom_call.1} parent=1 // pred_check
      _
    $region23: #{tpu_custom_call.1} parent=1 // pred_check_branch
      %52 = sbr.rel (0) target = $region25
    $region24: #{tpu_custom_call.1} parent=1 // pred_region
      %53 = dma.done [#allocation3], 128
    $region25: #{tpu_custom_call.1} parent=1 // pred_fallthru
      _
    // Predicated region
    $region26: #{tpu_custom_call.1} parent=1 // pred_check
      _
    $region27: #{tpu_custom_call.1} parent=1 // pred_check_branch
      %55 = sbr.rel (0) target = $region29
    $region28: #{tpu_custom_call.1} parent=1 // pred_region
      %56 = dma.done [#allocation6], 2048
    $region29: #{tpu_custom_call.1} parent=1 // pred_fallthru
      _
    // Predicated region
    $region30: #{tpu_custom_call.1} parent=1 // pred_check
      _
    $region31: #{tpu_custom_call.1} parent=1 // pred_check_branch
      %58 = sbr.rel (0) target = $region33
    $region32: #{tpu_custom_call.1} parent=1 // pred_region
      %59 = dma.done [#allocation6], 2048
    $region33: #{tpu_custom_call.1} parent=1 // pred_fallthru
      _
    %v60 = vld [vmem:[#allocation2] sm:$0xff]
    %v61 = vld [vmem:[#allocation5] sm:$0xff]
    %v62 = vld [vmem:[#allocation5 + $0x8] sm:$0xff]
    %v63 = vld [vmem:[#allocation5 + $0x10] sm:$0xff]
    %v64 = vld [vmem:[#allocation5 + $0x18] sm:$0xff]
    %v65 = vld [vmem:[#allocation5 + $0x20] sm:$0xff]
    %v66 = vld [vmem:[#allocation5 + $0x28] sm:$0xff]
    %v67 = vld [vmem:[#allocation5 + $0x30] sm:$0xff]
    %v68 = vld [vmem:[#allocation5 + $0x38] sm:$0xff]
    %v69 = vld [vmem:[#allocation5 + $0x40] sm:$0xff]
    %v70 = vld [vmem:[#allocation5 + $0x48] sm:$0xff]
    %v71 = vld [vmem:[#allocation5 + $0x50] sm:$0xff]
    %v72 = vld [vmem:[#allocation5 + $0x58] sm:$0xff]
    %v73 = vld [vmem:[#allocation5 + $0x60] sm:$0xff]
    %v74 = vld [vmem:[#allocation5 + $0x68] sm:$0xff]
    %v75 = vld [vmem:[#allocation5 + $0x70] sm:$0xff]
    %v76 = vld [vmem:[#allocation5 + $0x78] sm:$0xff]
    %v77 = vld [vmem:[%s2] sm:$0x1]
    %v79 = vlaneseq
    %v80 = vshrl.u32 %v79, 7
    %v81 = vsub.s32 0, %v80
    %v82 = vrot.slane %v77, %v81
    %84 = vmatprep.subr.mxu0 0.0
    %85 = vmatpush1.msra.mxu0 %v61
    %86 = vmatprep.subr.mxu0 0.0
    %87 = vmatpush1.msra.mxu0 %v62
    %88 = vmatprep.subr.mxu0 0.0
    %89 = vmatpush1.msra.mxu0 %v63
    %90 = vmatprep.subr.mxu0 0.0
    %91 = vmatpush1.msra.mxu0 %v64
    %92 = vmatprep.subr.mxu0 0.0
    %93 = vmatpush1.msra.mxu0 %v65
    %94 = vmatprep.subr.mxu0 0.0
    %95 = vmatpush1.msra.mxu0 %v66
    %96 = vmatprep.subr.mxu0 0.0
    %97 = vmatpush1.msra.mxu0 %v67
    %98 = vmatprep.subr.mxu0 0.0
    %99 = vmatpush1.msra.mxu0 %v68
    %100 = vmatprep.subr.mxu0 0.0
    %101 = vmatpush1.msra.mxu0 %v69
    %102 = vmatprep.subr.mxu0 0.0
    %103 = vmatpush1.msra.mxu0 %v70
    %104 = vmatprep.subr.mxu0 0.0
    %105 = vmatpush1.msra.mxu0 %v71
    %106 = vmatprep.subr.mxu0 0.0
    %107 = vmatpush1.msra.mxu0 %v72
    %108 = vmatprep.subr.mxu0 0.0
    %109 = vmatpush1.msra.mxu0 %v73
    %110 = vmatprep.subr.mxu0 0.0
    %111 = vmatpush1.msra.mxu0 %v74
    %112 = vmatprep.subr.mxu0 0.0
    %113 = vmatpush1.msra.mxu0 %v75
    %114 = vmatprep.subr.mxu0 0.0
    %115 = vmatpush1.msra.mxu0 %v76
    %116 = vmatprep.subr.mxu0 0.0
    %117 = vmatpush1.msra.mxu0 0.0
    %118 = vmatprep.subr.mxu0 0.0
    %119 = vmatpush1.msra.mxu0 0.0
    %120 = vmatprep.subr.mxu0 0.0
    %121 = vmatpush1.msra.mxu0 0.0
    %122 = vmatprep.subr.mxu0 0.0
    %123 = vmatpush1.msra.mxu0 0.0
    %124 = vmatprep.subr.mxu0 0.0
    %125 = vmatpush1.msra.mxu0 0.0
    %126 = vmatprep.subr.mxu0 0.0
    %127 = vmatpush1.msra.mxu0 0.0
    %128 = vmatprep.subr.mxu0 0.0
    %129 = vmatpush1.msra.mxu0 0.0
    %130 = vmatprep.subr.mxu0 0.0
    %131 = vmatpush1.msra.mxu0 0.0
    %132 = vmatprep.subr.mxu0 0.0
    %133 = vmatpush1.msra.mxu0 0.0
    %134 = vmatprep.subr.mxu0 0.0
    %135 = vmatpush1.msra.mxu0 0.0
    %136 = vmatprep.subr.mxu0 0.0
    %137 = vmatpush1.msra.mxu0 0.0
    %138 = vmatprep.subr.mxu0 0.0
    %139 = vmatpush1.msra.mxu0 0.0
    %140 = vmatprep.subr.mxu0 0.0
    %141 = vmatpush1.msra.mxu0 0.0
    %142 = vmatprep.subr.mxu0 0.0
    %143 = vmatpush1.msra.mxu0 0.0
    %144 = vmatprep.subr.mxu0 0.0
    %145 = vmatpush1.msra.mxu0 0.0
    %146 = vmatprep.subr.mxu0 0.0
    %147 = vmatpush1.msra.mxu0 0.0
    %148 = vmatprep.mubr.f32.mxu0 0.0
    %149 = vmatmul.mubr.f32.gmra.mrb[0].mxu0 %v60
    %v150 = vpop.f32.mrb[0].mxu0
    %v151 = vadd.f32 %v82, %v150
    %v152 = vpop.f32.mrb[0].mxu0
    %153 = vdwg.mxu0
    %v154 = vmax.f32 %v151, 0.0
    %v155 = vld [vmem:[#allocation7] sm:$0xff]
    %v156 = vld [vmem:[#allocation7 + $0x8] sm:$0xff]
    %v157 = vld [vmem:[#allocation7 + $0x10] sm:$0xff]
    %v158 = vld [vmem:[#allocation7 + $0x18] sm:$0xff]
    %v159 = vld [vmem:[#allocation7 + $0x20] sm:$0xff]
    %v160 = vld [vmem:[#allocation7 + $0x28] sm:$0xff]
    %v161 = vld [vmem:[#allocation7 + $0x30] sm:$0xff]
    %v162 = vld [vmem:[#allocation7 + $0x38] sm:$0xff]
    %v163 = vld [vmem:[#allocation7 + $0x40] sm:$0xff]
    %v164 = vld [vmem:[#allocation7 + $0x48] sm:$0xff]
    %v165 = vld [vmem:[#allocation7 + $0x50] sm:$0xff]
    %v166 = vld [vmem:[#allocation7 + $0x58] sm:$0xff]
    %v167 = vld [vmem:[#allocation7 + $0x60] sm:$0xff]
    %v168 = vld [vmem:[#allocation7 + $0x68] sm:$0xff]
    %v169 = vld [vmem:[#allocation7 + $0x70] sm:$0xff]
    %v170 = vld [vmem:[#allocation7 + $0x78] sm:$0xff]
    %v171 = vld [vmem:[%s4] sm:$0x1]
    %v173 = vlaneseq
    %v174 = vshrl.u32 %v173, 7
    %v175 = vsub.s32 0, %v174
    %v176 = vrot.slane %v171, %v175
    %178 = vmatprep.subr.mxu0 0.0
    %179 = vmatpush1.msra.mxu0 %v155
    %180 = vmatprep.subr.mxu0 0.0
    %181 = vmatpush1.msra.mxu0 %v156
    %182 = vmatprep.subr.mxu0 0.0
    %183 = vmatpush1.msra.mxu0 %v157
    %184 = vmatprep.subr.mxu0 0.0
    %185 = vmatpush1.msra.mxu0 %v158
    %186 = vmatprep.subr.mxu0 0.0
    %187 = vmatpush1.msra.mxu0 %v159
    %188 = vmatprep.subr.mxu0 0.0
    %189 = vmatpush1.msra.mxu0 %v160
    %190 = vmatprep.subr.mxu0 0.0
    %191 = vmatpush1.msra.mxu0 %v161
    %192 = vmatprep.subr.mxu0 0.0
    %193 = vmatpush1.msra.mxu0 %v162
    %194 = vmatprep.subr.mxu0 0.0
    %195 = vmatpush1.msra.mxu0 %v163
    %196 = vmatprep.subr.mxu0 0.0
    %197 = vmatpush1.msra.mxu0 %v164
    %198 = vmatprep.subr.mxu0 0.0
    %199 = vmatpush1.msra.mxu0 %v165
    %200 = vmatprep.subr.mxu0 0.0
    %201 = vmatpush1.msra.mxu0 %v166
    %202 = vmatprep.subr.mxu0 0.0
    %203 = vmatpush1.msra.mxu0 %v167
    %204 = vmatprep.subr.mxu0 0.0
    %205 = vmatpush1.msra.mxu0 %v168
    %206 = vmatprep.subr.mxu0 0.0
    %207 = vmatpush1.msra.mxu0 %v169
    %208 = vmatprep.subr.mxu0 0.0
    %209 = vmatpush1.msra.mxu0 %v170
    %210 = vmatprep.subr.mxu0 0.0
    %211 = vmatpush1.msra.mxu0 0.0
    %212 = vmatprep.subr.mxu0 0.0
    %213 = vmatpush1.msra.mxu0 0.0
    %214 = vmatprep.subr.mxu0 0.0
    %215 = vmatpush1.msra.mxu0 0.0
    %216 = vmatprep.subr.mxu0 0.0
    %217 = vmatpush1.msra.mxu0 0.0
    %218 = vmatprep.subr.mxu0 0.0
    %219 = vmatpush1.msra.mxu0 0.0
    %220 = vmatprep.subr.mxu0 0.0
    %221 = vmatpush1.msra.mxu0 0.0
    %222 = vmatprep.subr.mxu0 0.0
    %223 = vmatpush1.msra.mxu0 0.0
    %224 = vmatprep.subr.mxu0 0.0
    %225 = vmatpush1.msra.mxu0 0.0
    %226 = vmatprep.subr.mxu0 0.0
    %227 = vmatpush1.msra.mxu0 0.0
    %228 = vmatprep.subr.mxu0 0.0
    %229 = vmatpush1.msra.mxu0 0.0
    %230 = vmatprep.subr.mxu0 0.0
    %231 = vmatpush1.msra.mxu0 0.0
    %232 = vmatprep.subr.mxu0 0.0
    %233 = vmatpush1.msra.mxu0 0.0
    %234 = vmatprep.subr.mxu0 0.0
    %235 = vmatpush1.msra.mxu0 0.0
    %236 = vmatprep.subr.mxu0 0.0
    %237 = vmatpush1.msra.mxu0 0.0
    %238 = vmatprep.subr.mxu0 0.0
    %239 = vmatpush1.msra.mxu0 0.0
    %240 = vmatprep.subr.mxu0 0.0
    %241 = vmatpush1.msra.mxu0 0.0
    %242 = vmatprep.mubr.f32.mxu0 0.0
    %243 = vmatmul.mubr.f32.gmra.mrb[0].mxu0 %v154
    %v244 = vpop.f32.mrb[0].mxu0
    %v245 = vadd.f32 %v176, %v244
    %v246 = vpop.f32.mrb[0].mxu0
    %247 = vdwg.mxu0
    %v248 = vmax.f32 %v245, 0.0
    %249 = vst [vmem:[#allocation8] sm:$0xff] %v248
    // Predicated region
    $region34: #{tpu_custom_call.1} parent=1 // pred_check
      _
    $region35: #{tpu_custom_call.1} parent=1 // pred_check_branch
      %251 = sbr.rel (0) target = $region37
    $region36: #{tpu_custom_call.1} parent=1 // pred_region
      %s253 = ssub.s32 128, 128
      %254 = vsyncadd [#allocation4], %s253
      %s256 = sshll.u32 [#allocation8], 4
      %s257 = int_to_ptr.vmem [resolvable:$true] %s256
      %259 = dma.vmem_to_hbm [thread:$0]  %s257, 128, %s5, [#allocation4]
    $region37: #{tpu_custom_call.1} parent=1 // pred_fallthru
      _
    // Predicated region
    $region38: #{tpu_custom_call.1} parent=1 // pred_check
      _
    $region39: #{tpu_custom_call.1} parent=1 // pred_check_branch
      %261 = sbr.rel (0) target = $region41
    $region40: #{tpu_custom_call.1} parent=1 // pred_region
      %262 = dma.done [#allocation4], 128
    $region41: #{tpu_custom_call.1} parent=1 // pred_fallthru
      _
    %263 = vsyncpa [#allocation3], 1
    %264 = vsyncpa [#allocation6], 1
    %265 = vsyncpa [#allocation4], 1

// kernel: tpu_custom_call.1
$region0: #{tpu_custom_call.1}
  #allocation0 [shape = 'u32[]', space=smem, size = 0x4, offset = 0x4, fixed_abs, tag = 'smem constant byte address 0x4 - core index']
  #allocation1 [shape = 'u32[144,128]{1,0:T(1,128)}', space=vmem, size = 0x12000, scoped, tag = 'internal scratch']
  %s0 = inlined_call_operand.hbm [shape: f32[8,128], index: 0, kind: input, shape index: {}]
  %s1 = inlined_call_operand.hbm [shape: f32[128,128], index: 1, kind: input, shape index: {}]
  %s2 = inlined_call_operand.vmem [shape: f32[1,128], index: 2, kind: input, shape index: {}]
  %s3 = inlined_call_operand.hbm [shape: f32[128,128], index: 3, kind: input, shape index: {}]
  %s4 = inlined_call_operand.vmem [shape: f32[1,128], index: 4, kind: input, shape index: {}]
  %s5 = inlined_call_operand.hbm [shape: f32[8,128], index: 5, kind: output, shape index: {}]
  %s6 = sld [smem:[#allocation0]]
  $region42: #{tpu_custom_call.1} parent=0
    _
  %s8 = ssub.s32 1, %s6
  %s9 = scalar_select 0, %s8, %s6
  $region1: #{tpu_custom_call.1} parent=0
    #allocation2 [shape = 'u8[4096]{0}', space=vmem, size = 0x1000, scoped, tag = 'input window, operand 0, single buffered']
    #allocation3 [shape = 's32[1]{0}', space=sflag, size = 0x4, scoped, tag = 'scoped memory for tpu_custom_call.1']
    #allocation4 [shape = 's32[1]{0}', space=sflag, size = 0x4, scoped, tag = 'scoped memory for tpu_custom_call.1']
    #allocation5 [shape = 'u8[65536]{0}', space=vmem, size = 0x10000, scoped, tag = 'input window, operand 1, single buffered']
    #allocation6 [shape = 's32[1]{0}', space=sflag, size = 0x4, scoped, tag = 'scoped memory for tpu_custom_call.1']
    #allocation7 [shape = 'u8[65536]{0}', space=vmem, size = 0x10000, scoped, tag = 'input window, operand 3, single buffered']
    #allocation8 [shape = 'u8[4096]{0}', space=vmem, size = 0x1000, scoped, tag = 'output window, operand 0, single buffered']
    %10 = vsyncpa [#allocation3], 0
    %11 = vsyncpa [#allocation6], 0
    %12 = vsyncpa [#allocation4], 0
    // Predicated region
    $region2: #{tpu_custom_call.1} parent=1 // pred_check
      _
    $region3: #{tpu_custom_call.1} parent=1 // pred_check_branch
      %14 = sbr.rel (0) target = $region5
    $region4: #{tpu_custom_call.1} parent=1 // pred_region
      %s16 = ssub.s32 128, 128
      %17 = vsyncadd [#allocation3], %s16
      %s19 = sshll.u32 [#allocation2], 4
      %s20 = int_to_ptr.vmem [resolvable:$true] %s19
      %22 = dma.hbm_to_vmem [thread:$0]  %s0, 128, %s20, [#allocation3]
    $region5: #{tpu_custom_call.1} parent=1 // pred_fallthru
      _
    // Predicated region
    $region6: #{tpu_custom_call.1} parent=1 // pred_check
      _
    $region7: #{tpu_custom_call.1} parent=1 // pred_check_branch
      %24 = sbr.rel (0) target = $region9
    $region8: #{tpu_custom_call.1} parent=1 // pred_region
      %s26 = ssub.s32 2048, 2048
      %27 = vsyncadd [#allocation6], %s26
      %s28 = sshll.u32 [#allocation5], 4
      %s29 = int_to_ptr.vmem [resolvable:$true] %s28
      %34 = dma.hbm_to_vmem [thread:$0]  %s1, 2048, %s29, [#allocation6], 128, 128, 8
    $region9: #{tpu_custom_call.1} parent=1 // pred_fallthru
      _
    // Predicated region
    $region10: #{tpu_custom_call.1} parent=1 // pred_check
      _
    $region11: #{tpu_custom_call.1} parent=1 // pred_check_branch
      %36 = sbr.rel (0) target = $region13
    $region12: #{tpu_custom_call.1} parent=1 // pred_region
      _
    $region13: #{tpu_custom_call.1} parent=1 // pred_fallthru
      _
    // Predicated region
    $region14: #{tpu_custom_call.1} parent=1 // pred_check
      _
    $region15: #{tpu_custom_call.1} parent=1 // pred_check_branch
      %38 = sbr.rel (0) target = $region17
    $region16: #{tpu_custom_call.1} parent=1 // pred_region
      %s40 = ssub.s32 2048, 2048
      %41 = vsyncadd [#allocation6], %s40
      %s42 = sshll.u32 [#allocation7], 4
      %s43 = int_to_ptr.vmem [resolvable:$true] %s42
      %48 = dma.hbm_to_vmem [thread:$0]  %s3, 2048, %s43, [#allocation6], 128, 128, 8
    $region17: #{tpu_custom_call.1} parent=1 // pred_fallthru
      _
    // Predicated region
    $region18: #{tpu_custom_call.1} parent=1 // pred_check
      _
    $region19: #{tpu_custom_call.1} parent=1 // pred_check_branch
      %50 = sbr.rel (0) target = $region21
    $region20: #{tpu_custom_call.1} parent=1 // pred_region
      _
    $region21: #{tpu_custom_call.1} parent=1 // pred_fallthru
      _
    // Predicated region
    $region22: #{tpu_custom_call.1} parent=1 // pred_check
      _
    $region23: #{tpu_custom_call.1} parent=1 // pred_check_branch
      %52 = sbr.rel (0) target = $region25
    $region24: #{tpu_custom_call.1} parent=1 // pred_region
      %53 = dma.done [#allocation3], 128
    $region25: #{tpu_custom_call.1} parent=1 // pred_fallthru
      _
    // Predicated region
    $region26: #{tpu_custom_call.1} parent=1 // pred_check
      _
    $region27: #{tpu_custom_call.1} parent=1 // pred_check_branch
      %55 = sbr.rel (0) target = $region29
    $region28: #{tpu_custom_call.1} parent=1 // pred_region
      %56 = dma.done [#allocation6], 2048
    $region29: #{tpu_custom_call.1} parent=1 // pred_fallthru
      _
    // Predicated region
    $region30: #{tpu_custom_call.1} parent=1 // pred_check
      _
    $region31: #{tpu_custom_call.1} parent=1 // pred_check_branch
      %58 = sbr.rel (0) target = $region33
    $region32: #{tpu_custom_call.1} parent=1 // pred_region
      %59 = dma.done [#allocation6], 2048
    $region33: #{tpu_custom_call.1} parent=1 // pred_fallthru
      _
    %v60 = vld [vmem:[#allocation2] sm:$0xff]
    %v61 = vld [vmem:[#allocation5] sm:$0xff]
    %v62 = vld [vmem:[#allocation5 + $0x8] sm:$0xff]
    %v63 = vld [vmem:[#allocation5 + $0x10] sm:$0xff]
    %v64 = vld [vmem:[#allocation5 + $0x18] sm:$0xff]
    %v65 = vld [vmem:[#allocation5 + $0x20] sm:$0xff]
    %v66 = vld [vmem:[#allocation5 + $0x28] sm:$0xff]
    %v67 = vld [vmem:[#allocation5 + $0x30] sm:$0xff]
    %v68 = vld [vmem:[#allocation5 + $0x38] sm:$0xff]
    %v69 = vld [vmem:[#allocation5 + $0x40] sm:$0xff]
    %v70 = vld [vmem:[#allocation5 + $0x48] sm:$0xff]
    %v71 = vld [vmem:[#allocation5 + $0x50] sm:$0xff]
    %v72 = vld [vmem:[#allocation5 + $0x58] sm:$0xff]
    %v73 = vld [vmem:[#allocation5 + $0x60] sm:$0xff]
    %v74 = vld [vmem:[#allocation5 + $0x68] sm:$0xff]
    %v75 = vld [vmem:[#allocation5 + $0x70] sm:$0xff]
    %v76 = vld [vmem:[#allocation5 + $0x78] sm:$0xff]
    %v77 = vld [vmem:[%s2] sm:$0x1]
    %v79 = vlaneseq
    %v80 = vshrl.u32 %v79, 7
    %v81 = vsub.s32 0, %v80
    %v82 = vrot.slane %v77, %v81
    %84 = vmatprep.subr.mxu0 0.0
    %85 = vmatpush1.msra.mxu0 %v61
    %86 = vmatprep.subr.mxu0 0.0
    %87 = vmatpush1.msra.mxu0 %v62
    %88 = vmatprep.subr.mxu0 0.0
    %89 = vmatpush1.msra.mxu0 %v63
    %90 = vmatprep.subr.mxu0 0.0
    %91 = vmatpush1.msra.mxu0 %v64
    %92 = vmatprep.subr.mxu0 0.0
    %93 = vmatpush1.msra.mxu0 %v65
    %94 = vmatprep.subr.mxu0 0.0
    %95 = vmatpush1.msra.mxu0 %v66
    %96 = vmatprep.subr.mxu0 0.0
    %97 = vmatpush1.msra.mxu0 %v67
    %98 = vmatprep.subr.mxu0 0.0
    %99 = vmatpush1.msra.mxu0 %v68
    %100 = vmatprep.subr.mxu0 0.0
    %101 = vmatpush1.msra.mxu0 %v69
    %102 = vmatprep.subr.mxu0 0.0
    %103 = vmatpush1.msra.mxu0 %v70
    %104 = vmatprep.subr.mxu0 0.0
    %105 = vmatpush1.msra.mxu0 %v71
    %106 = vmatprep.subr.mxu0 0.0
    %107 = vmatpush1.msra.mxu0 %v72
    %108 = vmatprep.subr.mxu0 0.0
    %109 = vmatpush1.msra.mxu0 %v73
    %110 = vmatprep.subr.mxu0 0.0
    %111 = vmatpush1.msra.mxu0 %v74
    %112 = vmatprep.subr.mxu0 0.0
    %113 = vmatpush1.msra.mxu0 %v75
    %114 = vmatprep.subr.mxu0 0.0
    %115 = vmatpush1.msra.mxu0 %v76
    %116 = vmatprep.subr.mxu0 0.0
    %117 = vmatpush1.msra.mxu0 0.0
    %118 = vmatprep.subr.mxu0 0.0
    %119 = vmatpush1.msra.mxu0 0.0
    %120 = vmatprep.subr.mxu0 0.0
    %121 = vmatpush1.msra.mxu0 0.0
    %122 = vmatprep.subr.mxu0 0.0
    %123 = vmatpush1.msra.mxu0 0.0
    %124 = vmatprep.subr.mxu0 0.0
    %125 = vmatpush1.msra.mxu0 0.0
    %126 = vmatprep.subr.mxu0 0.0
    %127 = vmatpush1.msra.mxu0 0.0
    %128 = vmatprep.subr.mxu0 0.0
    %129 = vmatpush1.msra.mxu0 0.0
    %130 = vmatprep.subr.mxu0 0.0
    %131 = vmatpush1.msra.mxu0 0.0
    %132 = vmatprep.subr.mxu0 0.0
    %133 = vmatpush1.msra.mxu0 0.0
    %134 = vmatprep.subr.mxu0 0.0
    %135 = vmatpush1.msra.mxu0 0.0
    %136 = vmatprep.subr.mxu0 0.0
    %137 = vmatpush1.msra.mxu0 0.0
    %138 = vmatprep.subr.mxu0 0.0
    %139 = vmatpush1.msra.mxu0 0.0
    %140 = vmatprep.subr.mxu0 0.0
    %141 = vmatpush1.msra.mxu0 0.0
    %142 = vmatprep.subr.mxu0 0.0
    %143 = vmatpush1.msra.mxu0 0.0
    %144 = vmatprep.subr.mxu0 0.0
    %145 = vmatpush1.msra.mxu0 0.0
    %146 = vmatprep.subr.mxu0 0.0
    %147 = vmatpush1.msra.mxu0 0.0
    %148 = vmatprep.mubr.f32.mxu0 0.0
    %149 = vmatmul.mubr.f32.gmra.mrb[0].mxu0 %v60
    %v150 = vpop.f32.mrb[0].mxu0
    %v151 = vadd.f32 %v82, %v150
    %v152 = vpop.f32.mrb[0].mxu0
    %153 = vdwg.mxu0
    %v154 = vmax.f32 %v151, 0.0
    %v155 = vld [vmem:[#allocation7] sm:$0xff]
    %v156 = vld [vmem:[#allocation7 + $0x8] sm:$0xff]
    %v157 = vld [vmem:[#allocation7 + $0x10] sm:$0xff]
    %v158 = vld [vmem:[#allocation7 + $0x18] sm:$0xff]
    %v159 = vld [vmem:[#allocation7 + $0x20] sm:$0xff]
    %v160 = vld [vmem:[#allocation7 + $0x28] sm:$0xff]
    %v161 = vld [vmem:[#allocation7 + $0x30] sm:$0xff]
    %v162 = vld [vmem:[#allocation7 + $0x38] sm:$0xff]
    %v163 = vld [vmem:[#allocation7 + $0x40] sm:$0xff]
    %v164 = vld [vmem:[#allocation7 + $0x48] sm:$0xff]
    %v165 = vld [vmem:[#allocation7 + $0x50] sm:$0xff]
    %v166 = vld [vmem:[#allocation7 + $0x58] sm:$0xff]
    %v167 = vld [vmem:[#allocation7 + $0x60] sm:$0xff]
    %v168 = vld [vmem:[#allocation7 + $0x68] sm:$0xff]
    %v169 = vld [vmem:[#allocation7 + $0x70] sm:$0xff]
    %v170 = vld [vmem:[#allocation7 + $0x78] sm:$0xff]
    %v171 = vld [vmem:[%s4] sm:$0x1]
    %v173 = vlaneseq
    %v174 = vshrl.u32 %v173, 7
    %v175 = vsub.s32 0, %v174
    %v176 = vrot.slane %v171, %v175
    %178 = vmatprep.subr.mxu0 0.0
    %179 = vmatpush1.msra.mxu0 %v155
    %180 = vmatprep.subr.mxu0 0.0
    %181 = vmatpush1.msra.mxu0 %v156
    %182 = vmatprep.subr.mxu0 0.0
    %183 = vmatpush1.msra.mxu0 %v157
    %184 = vmatprep.subr.mxu0 0.0
    %185 = vmatpush1.msra.mxu0 %v158
    %186 = vmatprep.subr.mxu0 0.0
    %187 = vmatpush1.msra.mxu0 %v159
    %188 = vmatprep.subr.mxu0 0.0
    %189 = vmatpush1.msra.mxu0 %v160
    %190 = vmatprep.subr.mxu0 0.0
    %191 = vmatpush1.msra.mxu0 %v161
    %192 = vmatprep.subr.mxu0 0.0
    %193 = vmatpush1.msra.mxu0 %v162
    %194 = vmatprep.subr.mxu0 0.0
    %195 = vmatpush1.msra.mxu0 %v163
    %196 = vmatprep.subr.mxu0 0.0
    %197 = vmatpush1.msra.mxu0 %v164
    %198 = vmatprep.subr.mxu0 0.0
    %199 = vmatpush1.msra.mxu0 %v165
    %200 = vmatprep.subr.mxu0 0.0
    %201 = vmatpush1.msra.mxu0 %v166
    %202 = vmatprep.subr.mxu0 0.0
    %203 = vmatpush1.msra.mxu0 %v167
    %204 = vmatprep.subr.mxu0 0.0
    %205 = vmatpush1.msra.mxu0 %v168
    %206 = vmatprep.subr.mxu0 0.0
    %207 = vmatpush1.msra.mxu0 %v169
    %208 = vmatprep.subr.mxu0 0.0
    %209 = vmatpush1.msra.mxu0 %v170
    %210 = vmatprep.subr.mxu0 0.0
    %211 = vmatpush1.msra.mxu0 0.0
    %212 = vmatprep.subr.mxu0 0.0
    %213 = vmatpush1.msra.mxu0 0.0
    %214 = vmatprep.subr.mxu0 0.0
    %215 = vmatpush1.msra.mxu0 0.0
    %216 = vmatprep.subr.mxu0 0.0
    %217 = vmatpush1.msra.mxu0 0.0
    %218 = vmatprep.subr.mxu0 0.0
    %219 = vmatpush1.msra.mxu0 0.0
    %220 = vmatprep.subr.mxu0 0.0
    %221 = vmatpush1.msra.mxu0 0.0
    %222 = vmatprep.subr.mxu0 0.0
    %223 = vmatpush1.msra.mxu0 0.0
    %224 = vmatprep.subr.mxu0 0.0
    %225 = vmatpush1.msra.mxu0 0.0
    %226 = vmatprep.subr.mxu0 0.0
    %227 = vmatpush1.msra.mxu0 0.0
    %228 = vmatprep.subr.mxu0 0.0
    %229 = vmatpush1.msra.mxu0 0.0
    %230 = vmatprep.subr.mxu0 0.0
    %231 = vmatpush1.msra.mxu0 0.0
    %232 = vmatprep.subr.mxu0 0.0
    %233 = vmatpush1.msra.mxu0 0.0
    %234 = vmatprep.subr.mxu0 0.0
    %235 = vmatpush1.msra.mxu0 0.0
    %236 = vmatprep.subr.mxu0 0.0
    %237 = vmatpush1.msra.mxu0 0.0
    %238 = vmatprep.subr.mxu0 0.0
    %239 = vmatpush1.msra.mxu0 0.0
    %240 = vmatprep.subr.mxu0 0.0
    %241 = vmatpush1.msra.mxu0 0.0
    %242 = vmatprep.mubr.f32.mxu0 0.0
    %243 = vmatmul.mubr.f32.gmra.mrb[0].mxu0 %v154
    %v244 = vpop.f32.mrb[0].mxu0
    %v245 = vadd.f32 %v176, %v244
    %v246 = vpop.f32.mrb[0].mxu0
    %247 = vdwg.mxu0
    %v248 = vmax.f32 %v245, 0.0
    %249 = vst [vmem:[#allocation8] sm:$0xff] %v248
    // Predicated region
    $region34: #{tpu_custom_call.1} parent=1 // pred_check
      _
    $region35: #{tpu_custom_call.1} parent=1 // pred_check_branch
      %251 = sbr.rel (0) target = $region37
    $region36: #{tpu_custom_call.1} parent=1 // pred_region
      %s253 = ssub.s32 128, 128
      %254 = vsyncadd [#allocation4], %s253
      %s256 = sshll.u32 [#allocation8], 4
      %s257 = int_to_ptr.vmem [resolvable:$true] %s256
      %259 = dma.vmem_to_hbm [thread:$0]  %s257, 128, %s5, [#allocation4]
    $region37: #{tpu_custom_call.1} parent=1 // pred_fallthru
      _
    // Predicated region
    $region38: #{tpu_custom_call.1} parent=1 // pred_check
      _
    $region39: #{tpu_custom_call.1} parent=1 // pred_check_branch
      %261 = sbr.rel (0) target = $region41
    $region40: #{tpu_custom_call.1} parent=1 // pred_region
      %262 = dma.done [#allocation4], 128
    $region41: #{tpu_custom_call.1} parent=1 // pred_fallthru
      _
    %263 = vsyncpa [#allocation3], 1
    %264 = vsyncpa [#allocation6], 1
    %265 = vsyncpa [#allocation4], 1

</llo_original>
